<compile_context>
chip_gen: v7x
topology: tpu7x:2x2x1
jax: 0.10.0
libtpu: 0.0.40
codegen_flags: <defaults>
</compile_context>

<pallas_src>
import jax
import jax.numpy as jnp
from jax.experimental import pallas as pl
from jax.experimental.pallas import tpu as pltpu


# ----------------------------- Pallas kernel ----------------------------------

def fused_a3tgcn_head_kernel(x_ref,      # (B*T*N, Fp)  bf16  features, rows = (b, t, n)
                             sel_ref,    # (B*T, B*T*N) bf16  block-diag follower-row selector
                             pool_ref,   # (B, B*T)     f32   block-diag attention pooling
                             wzh_ref,    # (Fp, 2C)     bf16  [Wz@Wlz | Wh@Wlh] (gates folded)
                             hw_ref,     # (R, 128)     bf16  packed head weights w1|w2|w3(pad)
                             bias_ref,   # (8, W)       f32   row0=b1 row1=b2 row2=b3 row3=gate
                             out_ref):   # (B, 128)     f32   lane-dense; caller slices [:, :5]
    C = wzh_ref.shape[1] // 2

    # 1) shared feature transform -- one 256-row MXU issue: (B*T*N, Fp) @ (Fp, 2C)
    xw = jnp.dot(x_ref[...], wzh_ref[...], preferred_element_type=jnp.float32)

    # 2) follower-row GCN aggregation for every (batch, period): (B*T, 2C)
    bias = bias_ref[...]
    conv = jnp.dot(sel_ref[...], xw.astype(jnp.bfloat16),
                   preferred_element_type=jnp.float32)
    conv = conv + bias[3:4, :2 * C]

    # 3) TGCN gates with H = 0:  H_t = (1 - Z) * H_tilde      (all elementwise, f32)
    z = jax.nn.sigmoid(conv[:, :C])
    h_tilde = jnp.tanh(conv[:, C:])
    h_t = (1.0 - z) * h_tilde                                   # (B*T, C)

    # 4) attention-weighted temporal sum per batch: (B, C)
    hb = jnp.dot(pool_ref[...], h_t, preferred_element_type=jnp.float32)

    # 5) regression head: Linear -> LeakyReLU -> Linear -> LeakyReLU -> Linear, 4*sigmoid+1
    r2 = ((C + 15) // 16) * 16          # 16-aligned row offsets inside the packed slab
    r3 = r2 + 64
    hw = hw_ref[...]
    slope = jnp.float32(0.01)           # default LeakyReLU negative slope
    y = jnp.dot(hb.astype(jnp.bfloat16), hw[0:C, 0:64],
                preferred_element_type=jnp.float32) + bias[0:1, 0:64]
    y = jnp.where(y >= 0, y, slope * y)
    y = jnp.dot(y.astype(jnp.bfloat16), hw[r2:r2 + 64, 0:32],
                preferred_element_type=jnp.float32) + bias[1:2, 0:32]
    y = jnp.where(y >= 0, y, slope * y)
    y = jnp.dot(y.astype(jnp.bfloat16), hw[r3:r3 + 32, :],
                preferred_element_type=jnp.float32) + bias[2:3, 0:128]
    out_ref[...] = 4.0 * jax.nn.sigmoid(y) + 1.0


# ------------------------------- Wrapper ----------------------------------------

def build_ahat(edge_index, num_nodes):
    # Dense symmetric-normalized adjacency with self loops (PyG gcn_norm semantics:
    # messages flow src -> dst, add a self loop only where none exists, duplicate
    # edges accumulate weight -- matching PyG).  Glue done in plain JAX.
    src = edge_index[0]
    dst = edge_index[1]
    a = jnp.zeros((num_nodes, num_nodes), jnp.float32).at[dst, src].add(1.0)
    diag = jnp.diagonal(a)
    a = a + jnp.diag(jnp.where(diag > 0.0, 0.0, 1.0))
    deg = a.sum(axis=1)
    dinv = jnp.where(deg > 0, jax.lax.rsqrt(deg), 0.0)
    return dinv[:, None] * a * dinv[None, :]


def temporal_gnn_forward(items, params):
    x = items["x"]                                   # (B, T, N, F)
    edge_index = items["edge_index"][0]              # shared graph (same as the torch module)
    follower_ids = items["follower_ids"]             # (B,)
    B, T, N, F = x.shape
    C = params["wz"].shape[1]
    Fp = ((F + 127) // 128) * 128                    # lane-align the contraction dim
    BT, BTN = B * T, B * T * N

    # ---- plain-JAX packing (tiny, single pass over x) ----
    ahat = build_ahat(edge_index, N)                 # (N, N)
    probs = jax.nn.softmax(params["attention"])      # (T,)

    # follower-row selector, block-diagonal over (b, t):
    #   sel[b*T+t, (b*T+t)*N + n] = A_hat[follower_b, n]
    a_f = jnp.repeat(ahat[follower_ids, :], T, axis=0)                       # (BT, N)
    sel = (jnp.eye(BT, dtype=jnp.float32)[:, :, None] * a_f[:, None, :]
           ).reshape(BT, BTN).astype(jnp.bfloat16)

    # attention pooling, block-diagonal over b:  pool[b, b*T+t] = softmax(att)[t]
    pool = (jnp.eye(B, dtype=jnp.float32)[:, :, None] * probs[None, None, :]
            ).reshape(B, BT)

    # fold (B, T, N) into rows, pad features to the lane width, cast to bf16 (one pass)
    x_p = jnp.pad(x.reshape(BTN, F), ((0, 0), (0, Fp - F))).astype(jnp.bfloat16)

    # constant-fold the gate linears into the GCN weights (no nonlinearity in between):
    #   sigmoid((A X Wz + bz) Wlz + blz) = sigmoid(A X (Wz Wlz) + (bz Wlz + blz))
    wz_eff = params["wz"] @ params["wlz"]
    wh_eff = params["wh"] @ params["wlh"]
    wzh = jnp.pad(jnp.concatenate([wz_eff, wh_eff], axis=1),
                  ((0, Fp - F), (0, 0))).astype(jnp.bfloat16)                # (Fp, 2C)
    b_gate = jnp.concatenate([params["bz"] @ params["wlz"] + params["blz"],
                              params["bh"] @ params["wlh"] + params["blh"]], axis=1)

    # packed head-weight slab (bf16), row offsets 16-aligned, 128-lane wide
    r2 = ((C + 15) // 16) * 16
    r3 = r2 + 64
    hw = jnp.zeros((r3 + 32, 128), jnp.float32)
    hw = hw.at[0:C, 0:64].set(params["w1"])
    hw = hw.at[r2:r2 + 64, 0:32].set(params["w2"])
    hw = hw.at[r3:r3 + 32, 0:5].set(params["w3"])
    hw = hw.astype(jnp.bfloat16)

    # packed bias slab (f32): row0=b1, row1=b2, row2=b3(pad), row3=folded gate bias
    bw = max(128, 2 * C)
    bias = jnp.zeros((8, bw), jnp.float32)
    bias = bias.at[0, 0:64].set(params["b1"][0])
    bias = bias.at[1, 0:32].set(params["b2"][0])
    bias = bias.at[2, 0:5].set(params["b3"][0])
    bias = bias.at[3, 0:2 * C].set(b_gate[0])

    out = pl.pallas_call(
        fused_a3tgcn_head_kernel,
        out_shape=jax.ShapeDtypeStruct((B, 128), jnp.float32),
        grid=(1,),                                    # single step: whole batch folded in
        in_specs=[
            pl.BlockSpec((BTN, Fp), lambda i: (0, 0)),
            pl.BlockSpec((BT, BTN), lambda i: (0, 0)),
            pl.BlockSpec((B, BT), lambda i: (0, 0)),
            pl.BlockSpec((Fp, 2 * C), lambda i: (0, 0)),
            pl.BlockSpec((r3 + 32, 128), lambda i: (0, 0)),
            pl.BlockSpec((8, bw), lambda i: (0, 0)),
        ],
        out_specs=pl.BlockSpec((B, 128), lambda i: (0, 0)),
        compiler_params=pltpu.CompilerParams(
            dimension_semantics=("arbitrary",)),      # no batch-parallel split (see review)
    )(x_p, sel, pool, wzh, hw, bias)
    return out[:, :5]                                 # lane-dense store, slice to (B, 5)


# --------------------------- Pure-JAX reference ----------------------------------

def reference_forward(items, params):
    x = items["x"]
    edge_index = items["edge_index"][0]
    follower_ids = items["follower_ids"]
    B, T, N, F = x.shape
    ahat = build_ahat(edge_index, N)
    probs = jax.nn.softmax(params["attention"])
    C = params["wz"].shape[1]
    h_acc = jnp.zeros((B, N, C), jnp.float32)
    for t in range(T):
        xt = x[:, t]                                                     # (B, N, F)
        conv_z = jnp.einsum("ij,bjf,fc->bic", ahat, xt, params["wz"]) + params["bz"]
        conv_h = jnp.einsum("ij,bjf,fc->bic", ahat, xt, params["wh"]) + params["bh"]
        z = jax.nn.sigmoid(conv_z @ params["wlz"] + params["blz"])
        h_tilde = jnp.tanh(conv_h @ params["wlh"] + params["blh"])
        h_acc = h_acc + probs[t] * (1.0 - z) * h_tilde
    hb = h_acc[jnp.arange(B), follower_ids]                              # (B, C)
    y = hb @ params["w1"] + params["b1"]
    y = jnp.where(y >= 0, y, 0.01 * y)
    y = y @ params["w2"] + params["b2"]
    y = jnp.where(y >= 0, y, 0.01 * y)
    y = y @ params["w3"] + params["b3"]
    return 4.0 * jax.nn.sigmoid(y) + 1.0


# ---------------------------- Parameter init ------------------------------------

def init_params(key, node_features, out_channels, periods):
    F, C, T = node_features, out_channels, periods
    ks = jax.random.split(key, 18)
    u = lambda k, shape, s=0.1: (jax.random.uniform(k, shape, jnp.float32) * 2.0 - 1.0) * s
    return {
        "attention": u(ks[0], (T,), 1.0),
        # GCNConv weights (already transposed: (in, out)) + biases
        "wz": u(ks[1], (F, C)), "bz": u(ks[2], (1, C)),
        "wh": u(ks[3], (F, C)), "bh": u(ks[4], (1, C)),
        # linear_z / linear_h: only the conv half of the (2C -> C) weight matters (H = 0)
        "wlz": u(ks[5], (C, C)), "blz": u(ks[6], (1, C)),
        "wlh": u(ks[7], (C, C)), "blh": u(ks[8], (1, C)),
        # regression head
        "w1": u(ks[9], (C, 64)), "b1": u(ks[10], (1, 64)),
        "w2": u(ks[11], (64, 32)), "b2": u(ks[12], (1, 32)),
        "w3": u(ks[13], (32, 5)), "b3": u(ks[14], (1, 5)),
    }


# --------------------------------- Main ------------------------------------------

if __name__ == "__main__":
    # Small shapes consistent with the module (node_features=90 is hardcoded there).
    B, T, N, F, C = 2, 8, 16, 90, 32
    E = 48

    key = jax.random.PRNGKey(0)
    k_x, k_src, k_dst, k_f, k_p = jax.random.split(key, 5)

    x = jax.random.normal(k_x, (B, T, N, F), jnp.float32)
    src = jax.random.randint(k_src, (E,), 0, N)
    dst = jax.random.randint(k_dst, (E,), 0, N)
    edge_index = jnp.stack([src, dst]).astype(jnp.int32)          # (2, E)
    edge_index_b = jnp.broadcast_to(edge_index, (B, 2, E))        # batched, as in items
    follower_ids = jax.random.randint(k_f, (B,), 0, N)

    params = init_params(k_p, node_features=F, out_channels=C, periods=T)
    items = {"x": x, "edge_index": edge_index_b, "follower_ids": follower_ids}

    out = jax.block_until_ready(temporal_gnn_forward(items, params))
    ref = jax.block_until_ready(reference_forward(items, params))

    assert out.shape == (B, 5)
    assert bool(jnp.all(jnp.isfinite(out)))
    assert bool(jnp.all(out >= 1.0)) and bool(jnp.all(out <= 5.0))
    # bf16 matmul operands with f32 accumulation -> loosened tolerance vs f32 reference
    max_diff = float(jnp.max(jnp.abs(out - ref)))
    assert max_diff < 5e-2, f"max abs diff vs reference: {max_diff}"
    print("KERNEL_OK")
</pallas_src>

<mosaic_0001>
module attributes {stable_mosaic.version = 11 : i64} {
  func.func @fused_a3tgcn_head_kernel(%arg0: i32, %arg1: memref<256x128xbf16, #tpu.memory_space<vmem>>, %arg2: memref<16x256xbf16, #tpu.memory_space<vmem>>, %arg3: memref<2x16xf32, #tpu.memory_space<vmem>>, %arg4: memref<128x64xbf16, #tpu.memory_space<vmem>>, %arg5: memref<128x128xbf16, #tpu.memory_space<vmem>>, %arg6: memref<8x128xf32, #tpu.memory_space<vmem>>, %arg7: memref<2x128xf32, #tpu.memory_space<vmem>>) attributes {dimension_semantics = [#tpu.dimension_semantics<arbitrary>], iteration_bounds = array<i64: 1>, scalar_prefetch = 0 : i64, scratch_operands = 0 : i64, tpu.core_type = #tpu.core_type<tc>, window_params = [{pipeline_mode = #tpu.pipeline_mode<synchronous>, transform_indices = @transform_0, window_bounds = array<i64: 256, 128>}, {pipeline_mode = #tpu.pipeline_mode<synchronous>, transform_indices = @transform_1, window_bounds = array<i64: 16, 256>}, {pipeline_mode = #tpu.pipeline_mode<synchronous>, transform_indices = @transform_2, window_bounds = array<i64: 2, 16>}, {pipeline_mode = #tpu.pipeline_mode<synchronous>, transform_indices = @transform_3, window_bounds = array<i64: 128, 64>}, {pipeline_mode = #tpu.pipeline_mode<synchronous>, transform_indices = @transform_4, window_bounds = array<i64: 128, 128>}, {pipeline_mode = #tpu.pipeline_mode<synchronous>, transform_indices = @transform_5, window_bounds = array<i64: 8, 128>}, {pipeline_mode = #tpu.pipeline_mode<synchronous>, transform_indices = @transform_6, window_bounds = array<i64: 2, 128>}]} {
    %c0 = arith.constant 0 : index
    %c0_0 = arith.constant 0 : index
    %0 = vector.load %arg1[%c0, %c0_0] : memref<256x128xbf16, #tpu.memory_space<vmem>>, vector<256x128xbf16>
    %c0_1 = arith.constant 0 : index
    %c0_2 = arith.constant 0 : index
    %1 = vector.load %arg4[%c0_1, %c0_2] : memref<128x64xbf16, #tpu.memory_space<vmem>>, vector<128x64xbf16>
    %cst = arith.constant dense<0.000000e+00> : vector<256x64xf32>
    %2 = tpu.matmul %0, %1, %cst {dimension_numbers = #tpu.dot_dimension_numbers<[1], [0], [0], [1], [0, 0, 1, 1], [], []>} : vector<256x128xbf16>, vector<128x64xbf16>, vector<256x64xf32> -> vector<256x64xf32>
    %c0_3 = arith.constant 0 : index
    %c0_4 = arith.constant 0 : index
    %3 = vector.load %arg6[%c0_3, %c0_4] : memref<8x128xf32, #tpu.memory_space<vmem>>, vector<8x128xf32>
    %c0_5 = arith.constant 0 : index
    %c0_6 = arith.constant 0 : index
    %4 = vector.load %arg2[%c0_5, %c0_6] : memref<16x256xbf16, #tpu.memory_space<vmem>>, vector<16x256xbf16>
    %5 = arith.truncf %2 : vector<256x64xf32> to vector<256x64xbf16>
    %cst_7 = arith.constant dense<0.000000e+00> : vector<16x64xf32>
    %6 = tpu.matmul %4, %5, %cst_7 {dimension_numbers = #tpu.dot_dimension_numbers<[1], [0], [0], [1], [0, 0, 1, 1], [], []>} : vector<16x256xbf16>, vector<256x64xbf16>, vector<16x64xf32> -> vector<16x64xf32>
    %7 = vector.extract_strided_slice %3 {offsets = [3, 0], sizes = [1, 64], strides = [1, 1]} : vector<8x128xf32> to vector<1x64xf32>
    %8 = vector.broadcast %7 : vector<1x64xf32> to vector<16x64xf32>
    %9 = arith.addf %6, %8 : vector<16x64xf32>
    %10 = vector.extract_strided_slice %9 {offsets = [0, 0], sizes = [16, 32], strides = [1, 1]} : vector<16x64xf32> to vector<16x32xf32>
    %11 = arith.negf %10 : vector<16x32xf32>
    %12 = math.exp %11 : vector<16x32xf32>
    %cst_8 = arith.constant 1.000000e+00 : f32
    %13 = vector.broadcast %cst_8 : f32 to vector<16x32xf32>
    %14 = arith.addf %13, %12 : vector<16x32xf32>
    %15 = arith.divf %13, %14 : vector<16x32xf32>
    %16 = vector.extract_strided_slice %9 {offsets = [0, 32], sizes = [16, 32], strides = [1, 1]} : vector<16x64xf32> to vector<16x32xf32>
    %17 = math.tanh %16 : vector<16x32xf32>
    %cst_9 = arith.constant 1.000000e+00 : f32
    %18 = vector.broadcast %cst_9 : f32 to vector<16x32xf32>
    %19 = arith.subf %18, %15 : vector<16x32xf32>
    %20 = arith.mulf %19, %17 : vector<16x32xf32>
    %c0_10 = arith.constant 0 : index
    %c0_11 = arith.constant 0 : index
    %21 = vector.load %arg3[%c0_10, %c0_11] : memref<2x16xf32, #tpu.memory_space<vmem>>, vector<2x16xf32>
    %cst_12 = arith.constant dense<0.000000e+00> : vector<2x32xf32>
    %22 = tpu.matmul %21, %20, %cst_12 {dimension_numbers = #tpu.dot_dimension_numbers<[1], [0], [0], [1], [0, 0, 1, 1], [], []>} : vector<2x16xf32>, vector<16x32xf32>, vector<2x32xf32> -> vector<2x32xf32>
    %c0_13 = arith.constant 0 : index
    %c0_14 = arith.constant 0 : index
    %23 = vector.load %arg5[%c0_13, %c0_14] : memref<128x128xbf16, #tpu.memory_space<vmem>>, vector<128x128xbf16>
    %24 = arith.truncf %22 : vector<2x32xf32> to vector<2x32xbf16>
    %25 = vector.extract_strided_slice %23 {offsets = [0, 0], sizes = [32, 64], strides = [1, 1]} : vector<128x128xbf16> to vector<32x64xbf16>
    %cst_15 = arith.constant dense<0.000000e+00> : vector<2x64xf32>
    %26 = tpu.matmul %24, %25, %cst_15 {dimension_numbers = #tpu.dot_dimension_numbers<[1], [0], [0], [1], [0, 0, 1, 1], [], []>} : vector<2x32xbf16>, vector<32x64xbf16>, vector<2x64xf32> -> vector<2x64xf32>
    %27 = vector.extract_strided_slice %3 {offsets = [0, 0], sizes = [1, 64], strides = [1, 1]} : vector<8x128xf32> to vector<1x64xf32>
    %28 = vector.broadcast %27 : vector<1x64xf32> to vector<2x64xf32>
    %29 = arith.addf %26, %28 : vector<2x64xf32>
    %cst_16 = arith.constant 0.000000e+00 : f32
    %30 = vector.broadcast %cst_16 : f32 to vector<2x64xf32>
    %31 = arith.cmpf oge, %29, %30 : vector<2x64xf32>
    %cst_17 = arith.constant 0.00999999977 : f32
    %32 = vector.broadcast %cst_17 : f32 to vector<2x64xf32>
    %33 = arith.mulf %32, %29 : vector<2x64xf32>
    %34 = arith.select %31, %29, %33 : vector<2x64xi1>, vector<2x64xf32>
    %35 = arith.truncf %34 : vector<2x64xf32> to vector<2x64xbf16>
    %36 = vector.extract_strided_slice %23 {offsets = [32, 0], sizes = [64, 32], strides = [1, 1]} : vector<128x128xbf16> to vector<64x32xbf16>
    %cst_18 = arith.constant dense<0.000000e+00> : vector<2x32xf32>
    %37 = tpu.matmul %35, %36, %cst_18 {dimension_numbers = #tpu.dot_dimension_numbers<[1], [0], [0], [1], [0, 0, 1, 1], [], []>} : vector<2x64xbf16>, vector<64x32xbf16>, vector<2x32xf32> -> vector<2x32xf32>
    %38 = vector.extract_strided_slice %3 {offsets = [1, 0], sizes = [1, 32], strides = [1, 1]} : vector<8x128xf32> to vector<1x32xf32>
    %39 = vector.broadcast %38 : vector<1x32xf32> to vector<2x32xf32>
    %40 = arith.addf %37, %39 : vector<2x32xf32>
    %cst_19 = arith.constant 0.000000e+00 : f32
    %41 = vector.broadcast %cst_19 : f32 to vector<2x32xf32>
    %42 = arith.cmpf oge, %40, %41 : vector<2x32xf32>
    %cst_20 = arith.constant 0.00999999977 : f32
    %43 = vector.broadcast %cst_20 : f32 to vector<2x32xf32>
    %44 = arith.mulf %43, %40 : vector<2x32xf32>
    %45 = arith.select %42, %40, %44 : vector<2x32xi1>, vector<2x32xf32>
    %46 = arith.truncf %45 : vector<2x32xf32> to vector<2x32xbf16>
    %47 = vector.extract_strided_slice %23 {offsets = [96, 0], sizes = [32, 128], strides = [1, 1]} : vector<128x128xbf16> to vector<32x128xbf16>
    %cst_21 = arith.constant dense<0.000000e+00> : vector<2x128xf32>
    %48 = tpu.matmul %46, %47, %cst_21 {dimension_numbers = #tpu.dot_dimension_numbers<[1], [0], [0], [1], [0, 0, 1, 1], [], []>} : vector<2x32xbf16>, vector<32x128xbf16>, vector<2x128xf32> -> vector<2x128xf32>
    %49 = vector.extract_strided_slice %3 {offsets = [2, 0], sizes = [1, 128], strides = [1, 1]} : vector<8x128xf32> to vector<1x128xf32>
    %50 = vector.broadcast %49 : vector<1x128xf32> to vector<2x128xf32>
    %51 = arith.addf %48, %50 : vector<2x128xf32>
    %52 = arith.negf %51 : vector<2x128xf32>
    %53 = math.exp %52 : vector<2x128xf32>
    %cst_22 = arith.constant 1.000000e+00 : f32
    %54 = vector.broadcast %cst_22 : f32 to vector<2x128xf32>
    %55 = arith.addf %54, %53 : vector<2x128xf32>
    %56 = arith.divf %54, %55 : vector<2x128xf32>
    %cst_23 = arith.constant 4.000000e+00 : f32
    %57 = vector.broadcast %cst_23 : f32 to vector<2x128xf32>
    %58 = arith.mulf %57, %56 : vector<2x128xf32>
    %cst_24 = arith.constant 1.000000e+00 : f32
    %59 = vector.broadcast %cst_24 : f32 to vector<2x128xf32>
    %60 = arith.addf %58, %59 : vector<2x128xf32>
    %c0_25 = arith.constant 0 : index
    %c0_26 = arith.constant 0 : index
    %61 = vector.load %arg7[%c0_25, %c0_26] : memref<2x128xf32, #tpu.memory_space<vmem>>, vector<2x128xf32>
    tpu.vector_store %arg7[%c0_25, %c0_26], %60 {strides = array<i32>} : memref<2x128xf32, #tpu.memory_space<vmem>>, vector<2x128xf32>,
    return
  }
  func.func @transform_0(%arg0: i32) -> (i32, i32) {
    %c0_i32 = arith.constant 0 : i32
    %c0_i32_0 = arith.constant 0 : i32
    %c0_i32_1 = arith.constant 0 : i32
    return %c0_i32, %c0_i32_0 : i32, i32
  }
  func.func @transform_1(%arg0: i32) -> (i32, i32) {
    %c0_i32 = arith.constant 0 : i32
    %c0_i32_0 = arith.constant 0 : i32
    %c0_i32_1 = arith.constant 0 : i32
    return %c0_i32, %c0_i32_0 : i32, i32
  }
  func.func @transform_2(%arg0: i32) -> (i32, i32) {
    %c0_i32 = arith.constant 0 : i32
    %c0_i32_0 = arith.constant 0 : i32
    %c0_i32_1 = arith.constant 0 : i32
    return %c0_i32, %c0_i32_0 : i32, i32
  }
  func.func @transform_3(%arg0: i32) -> (i32, i32) {
    %c0_i32 = arith.constant 0 : i32
    %c0_i32_0 = arith.constant 0 : i32
    %c0_i32_1 = arith.constant 0 : i32
    return %c0_i32, %c0_i32_0 : i32, i32
  }
  func.func @transform_4(%arg0: i32) -> (i32, i32) {
    %c0_i32 = arith.constant 0 : i32
    %c0_i32_0 = arith.constant 0 : i32
    %c0_i32_1 = arith.constant 0 : i32
    return %c0_i32, %c0_i32_0 : i32, i32
  }
  func.func @transform_5(%arg0: i32) -> (i32, i32) {
    %c0_i32 = arith.constant 0 : i32
    %c0_i32_0 = arith.constant 0 : i32
    %c0_i32_1 = arith.constant 0 : i32
    return %c0_i32, %c0_i32_0 : i32, i32
  }
  func.func @transform_6(%arg0: i32) -> (i32, i32) {
    %c0_i32 = arith.constant 0 : i32
    %c0_i32_0 = arith.constant 0 : i32
    %c0_i32_1 = arith.constant 0 : i32
    return %c0_i32, %c0_i32_0 : i32, i32
  }
}

</mosaic_0001>

<llo_original>
// kernel: tpu_custom_call.1
$region0: #{tpu_custom_call.1}
  #allocation0 [shape = 'u32[]', space=smem, size = 0x4, offset = 0x4, fixed_abs, tag = 'smem constant byte address 0x4 - core index']
  #allocation1 [shape = 'u32[144,128]{1,0:T(1,128)}', space=vmem, size = 0x12000, scoped, tag = 'internal scratch']
  %s0 = inlined_call_operand.hbm [shape: bf16[256,128], index: 0, kind: input, shape index: {}]
  %s1 = inlined_call_operand.vmem [shape: bf16[16,256], index: 1, kind: input, shape index: {}]
  %s2 = inlined_call_operand.vmem [shape: f32[2,16], index: 2, kind: input, shape index: {}]
  %s3 = inlined_call_operand.vmem [shape: bf16[128,64], index: 3, kind: input, shape index: {}]
  %s4 = inlined_call_operand.vmem [shape: bf16[128,128], index: 4, kind: input, shape index: {}]
  %s5 = inlined_call_operand.vmem [shape: f32[8,128], index: 5, kind: input, shape index: {}]
  %s6 = inlined_call_operand.hbm [shape: f32[2,128], index: 6, kind: output, shape index: {}]
  %s7 = sld [smem:[#allocation0]]
  $region38: #{tpu_custom_call.1} parent=0
    _
  %s9 = ssub.s32 1, %s7
  %s10 = scalar_select 0, %s9, %s7
  $region1: #{tpu_custom_call.1} parent=0
    #allocation2 [shape = 'u8[65536]{0}', space=vmem, size = 0x10000, scoped, tag = 'input window, operand 0, single buffered']
    #allocation3 [shape = 's32[1]{0}', space=sflag, size = 0x4, scoped, tag = 'scoped memory for tpu_custom_call.1']
    #allocation4 [shape = 's32[1]{0}', space=sflag, size = 0x4, scoped, tag = 'scoped memory for tpu_custom_call.1']
    #allocation5 [shape = 'u8[1024]{0}', space=vmem, size = 0x400, scoped, tag = 'output window, operand 0, single buffered']
    %11 = vsyncpa [#allocation3], 0
    %12 = vsyncpa [#allocation4], 0
    // Predicated region
    $region2: #{tpu_custom_call.1} parent=1 // pred_check
      _
    $region3: #{tpu_custom_call.1} parent=1 // pred_check_branch
      %14 = sbr.rel (0) target = $region5
    $region4: #{tpu_custom_call.1} parent=1 // pred_region
      %s16 = ssub.s32 2048, 2048
      %17 = vsyncadd [#allocation3], %s16
      %s18 = sshll.u32 [#allocation2], 4
      %s19 = int_to_ptr.vmem [resolvable:$true] %s18
      %24 = dma.hbm_to_vmem [thread:$0]  %s0, 2048, %s19, [#allocation3], 64, 64, 4
    $region5: #{tpu_custom_call.1} parent=1 // pred_fallthru
      _
    // Predicated region
    $region6: #{tpu_custom_call.1} parent=1 // pred_check
      _
    $region7: #{tpu_custom_call.1} parent=1 // pred_check_branch
      %26 = sbr.rel (0) target = $region9
    $region8: #{tpu_custom_call.1} parent=1 // pred_region
      _
    $region9: #{tpu_custom_call.1} parent=1 // pred_fallthru
      _
    // Predicated region
    $region10: #{tpu_custom_call.1} parent=1 // pred_check
      _
    $region11: #{tpu_custom_call.1} parent=1 // pred_check_branch
      %28 = sbr.rel (0) target = $region13
    $region12: #{tpu_custom_call.1} parent=1 // pred_region
      _
    $region13: #{tpu_custom_call.1} parent=1 // pred_fallthru
      _
    // Predicated region
    $region14: #{tpu_custom_call.1} parent=1 // pred_check
      _
    $region15: #{tpu_custom_call.1} parent=1 // pred_check_branch
      %30 = sbr.rel (0) target = $region17
    $region16: #{tpu_custom_call.1} parent=1 // pred_region
      _
    $region17: #{tpu_custom_call.1} parent=1 // pred_fallthru
      _
    // Predicated region
    $region18: #{tpu_custom_call.1} parent=1 // pred_check
      _
    $region19: #{tpu_custom_call.1} parent=1 // pred_check_branch
      %32 = sbr.rel (0) target = $region21
    $region20: #{tpu_custom_call.1} parent=1 // pred_region
      _
    $region21: #{tpu_custom_call.1} parent=1 // pred_fallthru
      _
    // Predicated region
    $region22: #{tpu_custom_call.1} parent=1 // pred_check
      _
    $region23: #{tpu_custom_call.1} parent=1 // pred_check_branch
      %34 = sbr.rel (0) target = $region25
    $region24: #{tpu_custom_call.1} parent=1 // pred_region
      _
    $region25: #{tpu_custom_call.1} parent=1 // pred_fallthru
      _
    // Predicated region
    $region26: #{tpu_custom_call.1} parent=1 // pred_check
      _
    $region27: #{tpu_custom_call.1} parent=1 // pred_check_branch
      %36 = sbr.rel (0) target = $region29
    $region28: #{tpu_custom_call.1} parent=1 // pred_region
      %37 = dma.done [#allocation3], 2048
    $region29: #{tpu_custom_call.1} parent=1 // pred_fallthru
      _
    %v39 = vld [vmem:[#allocation2] sm:$0xf]
    %v40 = vld [vmem:[#allocation2 + $0x4] sm:$0xf]
    %v41 = vld [vmem:[#allocation2 + $0x8] sm:$0xf]
    %v42 = vld [vmem:[#allocation2 + $0xc] sm:$0xf]
    %v43 = vld [vmem:[#allocation2 + $0x10] sm:$0xf]
    %v44 = vld [vmem:[#allocation2 + $0x14] sm:$0xf]
    %v45 = vld [vmem:[#allocation2 + $0x18] sm:$0xf]
    %v46 = vld [vmem:[#allocation2 + $0x1c] sm:$0xf]
    %v47 = vld [vmem:[#allocation2 + $0x20] sm:$0xf]
    %v48 = vld [vmem:[#allocation2 + $0x24] sm:$0xf]
    %v49 = vld [vmem:[#allocation2 + $0x28] sm:$0xf]
    %v50 = vld [vmem:[#allocation2 + $0x2c] sm:$0xf]
    %v51 = vld [vmem:[#allocation2 + $0x30] sm:$0xf]
    %v52 = vld [vmem:[#allocation2 + $0x34] sm:$0xf]
    %v53 = vld [vmem:[#allocation2 + $0x38] sm:$0xf]
    %v54 = vld [vmem:[#allocation2 + $0x3c] sm:$0xf]
    %v55 = vld [vmem:[#allocation2 + $0x40] sm:$0xf]
    %v56 = vld [vmem:[#allocation2 + $0x44] sm:$0xf]
    %v57 = vld [vmem:[#allocation2 + $0x48] sm:$0xf]
    %v58 = vld [vmem:[#allocation2 + $0x4c] sm:$0xf]
    %v59 = vld [vmem:[#allocation2 + $0x50] sm:$0xf]
    %v60 = vld [vmem:[#allocation2 + $0x54] sm:$0xf]
    %v61 = vld [vmem:[#allocation2 + $0x58] sm:$0xf]
    %v62 = vld [vmem:[#allocation2 + $0x5c] sm:$0xf]
    %v63 = vld [vmem:[#allocation2 + $0x60] sm:$0xf]
    %v64 = vld [vmem:[#allocation2 + $0x64] sm:$0xf]
    %v65 = vld [vmem:[#allocation2 + $0x68] sm:$0xf]
    %v66 = vld [vmem:[#allocation2 + $0x6c] sm:$0xf]
    %v67 = vld [vmem:[#allocation2 + $0x70] sm:$0xf]
    %v68 = vld [vmem:[#allocation2 + $0x74] sm:$0xf]
    %v69 = vld [vmem:[#allocation2 + $0x78] sm:$0xf]
    %v70 = vld [vmem:[#allocation2 + $0x7c] sm:$0xf]
    %v71 = vld [vmem:[%s3] sm:$0xf]
    %v72 = vld [vmem:[%s3 + $0x4] sm:$0xf]
    %v73 = vld [vmem:[%s3 + $0x8] sm:$0xf]
    %v74 = vld [vmem:[%s3 + $0xc] sm:$0xf]
    %v75 = vld [vmem:[%s3 + $0x10] sm:$0xf]
    %v76 = vld [vmem:[%s3 + $0x14] sm:$0xf]
    %v77 = vld [vmem:[%s3 + $0x18] sm:$0xf]
    %v78 = vld [vmem:[%s3 + $0x1c] sm:$0xf]
    %v79 = vld [vmem:[%s3 + $0x20] sm:$0xf]
    %v80 = vld [vmem:[%s3 + $0x24] sm:$0xf]
    %v81 = vld [vmem:[%s3 + $0x28] sm:$0xf]
    %v82 = vld [vmem:[%s3 + $0x2c] sm:$0xf]
    %v83 = vld [vmem:[%s3 + $0x30] sm:$0xf]
    %v84 = vld [vmem:[%s3 + $0x34] sm:$0xf]
    %v85 = vld [vmem:[%s3 + $0x38] sm:$0xf]
    %v86 = vld [vmem:[%s3 + $0x3c] sm:$0xf]
    %v119 = vunpack.c.l.b16 %v39
    %v120 = vunpack.c.l.b16 %v40
    %v121 = vunpack.c.l.b16 %v41
    %v122 = vunpack.c.l.b16 %v42
    %v123 = vunpack.c.l.b16 %v43
    %v124 = vunpack.c.l.b16 %v44
    %v125 = vunpack.c.l.b16 %v45
    %v126 = vunpack.c.l.b16 %v46
    %v127 = vunpack.c.l.b16 %v47
    %v128 = vunpack.c.l.b16 %v48
    %v129 = vunpack.c.l.b16 %v49
    %v130 = vunpack.c.l.b16 %v50
    %v131 = vunpack.c.l.b16 %v51
    %v132 = vunpack.c.l.b16 %v52
    %v133 = vunpack.c.l.b16 %v53
    %v134 = vunpack.c.l.b16 %v54
    %v135 = vunpack.c.l.b16 %v55
    %v136 = vunpack.c.l.b16 %v56
    %v137 = vunpack.c.l.b16 %v57
    %v138 = vunpack.c.l.b16 %v58
    %v139 = vunpack.c.l.b16 %v59
    %v140 = vunpack.c.l.b16 %v60
    %v141 = vunpack.c.l.b16 %v61
    %v142 = vunpack.c.l.b16 %v62
    %v143 = vunpack.c.l.b16 %v63
    %v144 = vunpack.c.l.b16 %v64
    %v145 = vunpack.c.l.b16 %v65
    %v146 = vunpack.c.l.b16 %v66
    %v147 = vunpack.c.l.b16 %v67
    %v148 = vunpack.c.l.b16 %v68
    %v149 = vunpack.c.l.b16 %v69
    %v150 = vunpack.c.l.b16 %v70
    %v151 = vpack.c.b16 %v120, %v119
    %v152 = vpack.c.b16 %v122, %v121
    %v153 = vpack.c.b16 %v124, %v123
    %v154 = vpack.c.b16 %v126, %v125
    %v155 = vpack.c.b16 %v128, %v127
    %v156 = vpack.c.b16 %v130, %v129
    %v157 = vpack.c.b16 %v132, %v131
    %v158 = vpack.c.b16 %v134, %v133
    %v159 = vpack.c.b16 %v136, %v135
    %v160 = vpack.c.b16 %v138, %v137
    %v161 = vpack.c.b16 %v140, %v139
    %v162 = vpack.c.b16 %v142, %v141
    %v163 = vpack.c.b16 %v144, %v143
    %v164 = vpack.c.b16 %v146, %v145
    %v165 = vpack.c.b16 %v148, %v147
    %v166 = vpack.c.b16 %v150, %v149
    %v199 = vunpack.c.l.b16 %v71
    %v200 = vunpack.c.l.b16 %v72
    %v201 = vunpack.c.l.b16 %v73
    %v202 = vunpack.c.l.b16 %v74
    %v203 = vunpack.c.l.b16 %v75
    %v204 = vunpack.c.l.b16 %v76
    %v205 = vunpack.c.l.b16 %v77
    %v206 = vunpack.c.l.b16 %v78
    %v207 = vunpack.c.l.b16 %v79
    %v208 = vunpack.c.l.b16 %v80
    %v209 = vunpack.c.l.b16 %v81
    %v210 = vunpack.c.l.b16 %v82
    %v211 = vunpack.c.l.b16 %v83
    %v212 = vunpack.c.l.b16 %v84
    %v213 = vunpack.c.l.b16 %v85
    %v214 = vunpack.c.l.b16 %v86
    %v215 = vpack.c.b16 %v200, %v199
    %v216 = vpack.c.b16 %v202, %v201
    %v217 = vpack.c.b16 %v204, %v203
    %v218 = vpack.c.b16 %v206, %v205
    %v219 = vpack.c.b16 %v208, %v207
    %v220 = vpack.c.b16 %v210, %v209
    %v221 = vpack.c.b16 %v212, %v211
    %v222 = vpack.c.b16 %v214, %v213
    %231 = vmatprep.subr.bf16.mxu0 0
    %232 = vmatpush1.bf16.msra.mxu0 %v215
    %233 = vmatprep.subr.bf16.mxu0 0
    %234 = vmatpush1.bf16.msra.mxu0 %v216
    %235 = vmatprep.subr.bf16.mxu0 0
    %236 = vmatpush1.bf16.msra.mxu0 %v217
    %237 = vmatprep.subr.bf16.mxu0 0
    %238 = vmatpush1.bf16.msra.mxu0 %v218
    %239 = vmatprep.subr.bf16.mxu0 0
    %240 = vmatpush1.bf16.msra.mxu0 %v219
    %241 = vmatprep.subr.bf16.mxu0 0
    %242 = vmatpush1.bf16.msra.mxu0 %v220
    %243 = vmatprep.subr.bf16.mxu0 0
    %244 = vmatpush1.bf16.msra.mxu0 %v221
    %245 = vmatprep.subr.bf16.mxu0 0
    %246 = vmatpush1.bf16.msra.mxu0 %v222
    %247 = vmatprep.subr.bf16.mxu0 0
    %248 = vmatpush1.bf16.msra.mxu0 0
    %249 = vmatprep.subr.bf16.mxu0 0
    %250 = vmatpush1.bf16.msra.mxu0 0
    %251 = vmatprep.subr.bf16.mxu0 0
    %252 = vmatpush1.bf16.msra.mxu0 0
    %253 = vmatprep.subr.bf16.mxu0 0
    %254 = vmatpush1.bf16.msra.mxu0 0
    %255 = vmatprep.subr.bf16.mxu0 0
    %256 = vmatpush1.bf16.msra.mxu0 0
    %257 = vmatprep.subr.bf16.mxu0 0
    %258 = vmatpush1.bf16.msra.mxu0 0
    %259 = vmatprep.subr.bf16.mxu0 0
    %260 = vmatpush1.bf16.msra.mxu0 0
    %261 = vmatprep.subr.bf16.mxu0 0
    %262 = vmatpush1.bf16.msra.mxu0 0
    %263 = vmatprep.mubr.bf16.mxu0 0
    %264 = vmatmul.mubr.bf16.gmra.mrb[0].mxu0 %v151
    %v265 = vpop.f32.mrb[0].mxu0
    %v266 = vadd.f32 0.0, %v265
    %v267 = vpop.f32.mrb[0].mxu0
    %v268 = vpop.f32.mrb[0].mxu0
    %v269 = vadd.f32 0.0, %v268
    %v270 = vpop.f32.mrb[0].mxu0
    %271 = vmatprep.mubr.bf16.mxu0 0
    %272 = vmatmul.mubr.bf16.gmra.mrb[0].mxu0 %v152
    %v273 = vpop.f32.mrb[0].mxu0
    %v274 = vadd.f32 0.0, %v273
    %v275 = vpop.f32.mrb[0].mxu0
    %v276 = vpop.f32.mrb[0].mxu0
    %v277 = vadd.f32 0.0, %v276
    %v278 = vpop.f32.mrb[0].mxu0
    %279 = vmatprep.mubr.bf16.mxu0 0
    %280 = vmatmul.mubr.bf16.gmra.mrb[0].mxu0 %v153
    %v281 = vpop.f32.mrb[0].mxu0
    %v282 = vadd.f32 0.0, %v281
    %v283 = vpop.f32.mrb[0].mxu0
    %v284 = vpop.f32.mrb[0].mxu0
    %v285 = vadd.f32 0.0, %v284
    %v286 = vpop.f32.mrb[0].mxu0
    %287 = vmatprep.mubr.bf16.mxu0 0
    %288 = vmatmul.mubr.bf16.gmra.mrb[0].mxu0 %v154
    %v289 = vpop.f32.mrb[0].mxu0
    %v290 = vadd.f32 0.0, %v289
    %v291 = vpop.f32.mrb[0].mxu0
    %v292 = vpop.f32.mrb[0].mxu0
    %v293 = vadd.f32 0.0, %v292
    %v294 = vpop.f32.mrb[0].mxu0
    %295 = vmatprep.mubr.bf16.mxu0 0
    %296 = vmatmul.mubr.bf16.gmra.mrb[0].mxu0 %v155
    %v297 = vpop.f32.mrb[0].mxu0
    %v298 = vadd.f32 0.0, %v297
    %v299 = vpop.f32.mrb[0].mxu0
    %v300 = vpop.f32.mrb[0].mxu0
    %v301 = vadd.f32 0.0, %v300
    %v302 = vpop.f32.mrb[0].mxu0
    %303 = vmatprep.mubr.bf16.mxu0 0
    %304 = vmatmul.mubr.bf16.gmra.mrb[0].mxu0 %v156
    %v305 = vpop.f32.mrb[0].mxu0
    %v306 = vadd.f32 0.0, %v305
    %v307 = vpop.f32.mrb[0].mxu0
    %v308 = vpop.f32.mrb[0].mxu0
    %v309 = vadd.f32 0.0, %v308
    %v310 = vpop.f32.mrb[0].mxu0
    %311 = vmatprep.mubr.bf16.mxu0 0
    %312 = vmatmul.mubr.bf16.gmra.mrb[0].mxu0 %v157
    %v313 = vpop.f32.mrb[0].mxu0
    %v314 = vadd.f32 0.0, %v313
    %v315 = vpop.f32.mrb[0].mxu0
    %v316 = vpop.f32.mrb[0].mxu0
    %v317 = vadd.f32 0.0, %v316
    %v318 = vpop.f32.mrb[0].mxu0
    %319 = vmatprep.mubr.bf16.mxu0 0
    %320 = vmatmul.mubr.bf16.gmra.mrb[0].mxu0 %v158
    %v321 = vpop.f32.mrb[0].mxu0
    %v322 = vadd.f32 0.0, %v321
    %v323 = vpop.f32.mrb[0].mxu0
    %v324 = vpop.f32.mrb[0].mxu0
    %v325 = vadd.f32 0.0, %v324
    %v326 = vpop.f32.mrb[0].mxu0
    %327 = vmatprep.mubr.bf16.mxu0 0
    %328 = vmatmul.mubr.bf16.gmra.mrb[0].mxu0 %v159
    %v329 = vpop.f32.mrb[0].mxu0
    %v330 = vadd.f32 0.0, %v329
    %v331 = vpop.f32.mrb[0].mxu0
    %v332 = vpop.f32.mrb[0].mxu0
    %v333 = vadd.f32 0.0, %v332
    %v334 = vpop.f32.mrb[0].mxu0
    %335 = vmatprep.mubr.bf16.mxu0 0
    %336 = vmatmul.mubr.bf16.gmra.mrb[0].mxu0 %v160
    %v337 = vpop.f32.mrb[0].mxu0
    %v338 = vadd.f32 0.0, %v337
    %v339 = vpop.f32.mrb[0].mxu0
    %v340 = vpop.f32.mrb[0].mxu0
    %v341 = vadd.f32 0.0, %v340
    %v342 = vpop.f32.mrb[0].mxu0
    %343 = vmatprep.mubr.bf16.mxu0 0
    %344 = vmatmul.mubr.bf16.gmra.mrb[0].mxu0 %v161
    %v345 = vpop.f32.mrb[0].mxu0
    %v346 = vadd.f32 0.0, %v345
    %v347 = vpop.f32.mrb[0].mxu0
    %v348 = vpop.f32.mrb[0].mxu0
    %v349 = vadd.f32 0.0, %v348
    %v350 = vpop.f32.mrb[0].mxu0
    %351 = vmatprep.mubr.bf16.mxu0 0
    %352 = vmatmul.mubr.bf16.gmra.mrb[0].mxu0 %v162
    %v353 = vpop.f32.mrb[0].mxu0
    %v354 = vadd.f32 0.0, %v353
    %v355 = vpop.f32.mrb[0].mxu0
    %v356 = vpop.f32.mrb[0].mxu0
    %v357 = vadd.f32 0.0, %v356
    %v358 = vpop.f32.mrb[0].mxu0
    %359 = vmatprep.mubr.bf16.mxu0 0
    %360 = vmatmul.mubr.bf16.gmra.mrb[0].mxu0 %v163
    %v361 = vpop.f32.mrb[0].mxu0
    %v362 = vadd.f32 0.0, %v361
    %v363 = vpop.f32.mrb[0].mxu0
    %v364 = vpop.f32.mrb[0].mxu0
    %v365 = vadd.f32 0.0, %v364
    %v366 = vpop.f32.mrb[0].mxu0
    %367 = vmatprep.mubr.bf16.mxu0 0
    %368 = vmatmul.mubr.bf16.gmra.mrb[0].mxu0 %v164
    %v369 = vpop.f32.mrb[0].mxu0
    %v370 = vadd.f32 0.0, %v369
    %v371 = vpop.f32.mrb[0].mxu0
    %v372 = vpop.f32.mrb[0].mxu0
    %v373 = vadd.f32 0.0, %v372
    %v374 = vpop.f32.mrb[0].mxu0
    %375 = vmatprep.mubr.bf16.mxu0 0
    %376 = vmatmul.mubr.bf16.gmra.mrb[0].mxu0 %v165
    %v377 = vpop.f32.mrb[0].mxu0
    %v378 = vadd.f32 0.0, %v377
    %v379 = vpop.f32.mrb[0].mxu0
    %v380 = vpop.f32.mrb[0].mxu0
    %v381 = vadd.f32 0.0, %v380
    %v382 = vpop.f32.mrb[0].mxu0
    %383 = vmatprep.mubr.bf16.mxu0 0
    %384 = vmatmul.mubr.bf16.gmra.mrb[0].mxu0 %v166
    %v385 = vpop.f32.mrb[0].mxu0
    %v386 = vadd.f32 0.0, %v385
    %v387 = vpop.f32.mrb[0].mxu0
    %v388 = vpop.f32.mrb[0].mxu0
    %v389 = vadd.f32 0.0, %v388
    %v390 = vpop.f32.mrb[0].mxu0
    %391 = vdwg.mxu0
    %v392 = vld [vmem:[%s5] sm:$0xff]
    %v393 = vld [vmem:[%s1] sm:$0xff]
    %v394 = vld [vmem:[%s1 + $0x8] sm:$0xff]
    %v395 = vpack.c.bf16 %v269, %v266
    %v396 = vpack.c.bf16 %v277, %v274
    %v397 = vpack.c.bf16 %v285, %v282
    %v398 = vpack.c.bf16 %v293, %v290
    %v399 = vpack.c.bf16 %v301, %v298
    %v400 = vpack.c.bf16 %v309, %v306
    %v401 = vpack.c.bf16 %v317, %v314
    %v402 = vpack.c.bf16 %v325, %v322
    %v403 = vpack.c.bf16 %v333, %v330
    %v404 = vpack.c.bf16 %v341, %v338
    %v405 = vpack.c.bf16 %v349, %v346
    %v406 = vpack.c.bf16 %v357, %v354
    %v407 = vpack.c.bf16 %v365, %v362
    %v408 = vpack.c.bf16 %v373, %v370
    %v409 = vpack.c.bf16 %v381, %v378
    %v410 = vpack.c.bf16 %v389, %v386
    %v411 = vlaneseq
    %v412 = vshrl.u32 %v411, 7
    %v413 = vsub.s32 3, %v412
    %v414 = vrot.slane %v392, %v413
    %v417 = vunpack.c.l.b16 %v393
    %v418 = vunpack.c.h.b16 %v393
    %v419 = vunpack.c.l.b16 %v394
    %v420 = vunpack.c.h.b16 %v394
    %v421 = vpack.c.b16 %v419, %v417
    %v422 = vpack.c.b16 %v420, %v418
    %425 = vmatprep.subr.bf16.mxu0 0
    %426 = vmatpush1.bf16.msra.mxu0 %v395
    %427 = vmatprep.subr.bf16.mxu0 0
    %428 = vmatpush1.bf16.msra.mxu0 %v396
    %429 = vmatprep.subr.bf16.mxu0 0
    %430 = vmatpush1.bf16.msra.mxu0 %v397
    %431 = vmatprep.subr.bf16.mxu0 0
    %432 = vmatpush1.bf16.msra.mxu0 %v398
    %433 = vmatprep.subr.bf16.mxu0 0
    %434 = vmatpush1.bf16.msra.mxu0 %v399
    %435 = vmatprep.subr.bf16.mxu0 0
    %436 = vmatpush1.bf16.msra.mxu0 %v400
    %437 = vmatprep.subr.bf16.mxu0 0
    %438 = vmatpush1.bf16.msra.mxu0 %v401
    %439 = vmatprep.subr.bf16.mxu0 0
    %440 = vmatpush1.bf16.msra.mxu0 %v402
    %441 = vmatprep.subr.bf16.mxu0 0
    %442 = vmatpush1.bf16.msra.mxu0 %v403
    %443 = vmatprep.subr.bf16.mxu0 0
    %444 = vmatpush1.bf16.msra.mxu0 %v404
    %445 = vmatprep.subr.bf16.mxu0 0
    %446 = vmatpush1.bf16.msra.mxu0 %v405
    %447 = vmatprep.subr.bf16.mxu0 0
    %448 = vmatpush1.bf16.msra.mxu0 %v406
    %449 = vmatprep.subr.bf16.mxu0 0
    %450 = vmatpush1.bf16.msra.mxu0 %v407
    %451 = vmatprep.subr.bf16.mxu0 0
    %452 = vmatpush1.bf16.msra.mxu0 %v408
    %453 = vmatprep.subr.bf16.mxu0 0
    %454 = vmatpush1.bf16.msra.mxu0 %v409
    %455 = vmatprep.subr.bf16.mxu0 0
    %456 = vmatpush1.bf16.msra.mxu0 %v410
    %457 = vmatprep.mubr.bf16.mxu0 %v422
    %458 = vmatmul.mubr.bf16.gmra.mrb[0].mxu0 %v421
    %v459 = vpop.f32.mrb[0].mxu0
    %v460 = vadd.f32 %v414, %v459
    %v461 = vpop.f32.mrb[0].mxu0
    %v462 = vpop.f32.mrb[0].mxu0
    %v463 = vadd.f32 %v414, %v462
    %v464 = vpop.f32.mrb[0].mxu0
    %465 = vdwg.mxu0
    %v466 = vxor.u32 %v460, 2147483648
    %v467 = vxor.u32 %v463, 2147483648
    %v468 = vmul.f32 %v466, 1.442695
    %v469 = vpow.pop %v468
    %v470 = vmul.f32 %v467, 1.442695
    %v471 = vpow.pop %v470
    %v472 = vadd.f32 %v469, 1.0
    %v473 = vadd.f32 %v471, 1.0
    %v474 = vrcp.pop %v472
    %v475 = vmul.f32 1.0, %v474
    %v476 = vrcp.pop %v473
    %v477 = vmul.f32 1.0, %v476
    %v478 = vtanh.pop %v460
    %v479 = vtanh.pop %v463
    %v480 = vsub.f32 1.0, %v475
    %v481 = vsub.f32 1.0, %v477
    %484 = vrot.lane.b32.xlu0 %v478, 96
    %v485 = vpop.permute.xlu0 %484
    %486 = vrot.lane.b32.xlu0 %v479, 96
    %v487 = vpop.permute.xlu0 %486
    %v490 = vmul.f32 %v480, %v485
    %v491 = vmul.f32 %v481, %v487
    %v492 = vld [vmem:[%s2] sm:$0x3]
    %vm493 = vcmask 130048
    %v495 = vsel %vm493, %v492, 0
    %497 = vmatprep.subr.mxu0 0.0
    %498 = vmatpush1.msra.mxu0 %v490
    %499 = vmatprep.subr.mxu0 0.0
    %500 = vmatpush1.msra.mxu0 %v491
    %501 = vmatprep.subr.mxu0 0.0
    %502 = vmatpush1.msra.mxu0 0.0
    %503 = vmatprep.subr.mxu0 0.0
    %504 = vmatpush1.msra.mxu0 0.0
    %505 = vmatprep.subr.mxu0 0.0
    %506 = vmatpush1.msra.mxu0 0.0
    %507 = vmatprep.subr.mxu0 0.0
    %508 = vmatpush1.msra.mxu0 0.0
    %509 = vmatprep.subr.mxu0 0.0
    %510 = vmatpush1.msra.mxu0 0.0
    %511 = vmatprep.subr.mxu0 0.0
    %512 = vmatpush1.msra.mxu0 0.0
    %513 = vmatprep.subr.mxu0 0.0
    %514 = vmatpush1.msra.mxu0 0.0
    %515 = vmatprep.subr.mxu0 0.0
    %516 = vmatpush1.msra.mxu0 0.0
    %517 = vmatprep.subr.mxu0 0.0
    %518 = vmatpush1.msra.mxu0 0.0
    %519 = vmatprep.subr.mxu0 0.0
    %520 = vmatpush1.msra.mxu0 0.0
    %521 = vmatprep.subr.mxu0 0.0
    %522 = vmatpush1.msra.mxu0 0.0
    %523 = vmatprep.subr.mxu0 0.0
    %524 = vmatpush1.msra.mxu0 0.0
    %525 = vmatprep.subr.mxu0 0.0
    %526 = vmatpush1.msra.mxu0 0.0
    %527 = vmatprep.subr.mxu0 0.0
    %528 = vmatpush1.msra.mxu0 0.0
    %529 = vmatprep.subr.mxu0 0.0
    %530 = vmatpush1.msra.mxu0 0.0
    %531 = vmatprep.subr.mxu0 0.0
    %532 = vmatpush1.msra.mxu0 0.0
    %533 = vmatprep.subr.mxu0 0.0
    %534 = vmatpush1.msra.mxu0 0.0
    %535 = vmatprep.subr.mxu0 0.0
    %536 = vmatpush1.msra.mxu0 0.0
    %537 = vmatprep.subr.mxu0 0.0
    %538 = vmatpush1.msra.mxu0 0.0
    %539 = vmatprep.subr.mxu0 0.0
    %540 = vmatpush1.msra.mxu0 0.0
    %541 = vmatprep.subr.mxu0 0.0
    %542 = vmatpush1.msra.mxu0 0.0
    %543 = vmatprep.subr.mxu0 0.0
    %544 = vmatpush1.msra.mxu0 0.0
    %545 = vmatprep.subr.mxu0 0.0
    %546 = vmatpush1.msra.mxu0 0.0
    %547 = vmatprep.subr.mxu0 0.0
    %548 = vmatpush1.msra.mxu0 0.0
    %549 = vmatprep.subr.mxu0 0.0
    %550 = vmatpush1.msra.mxu0 0.0
    %551 = vmatprep.subr.mxu0 0.0
    %552 = vmatpush1.msra.mxu0 0.0
    %553 = vmatprep.subr.mxu0 0.0
    %554 = vmatpush1.msra.mxu0 0.0
    %555 = vmatprep.subr.mxu0 0.0
    %556 = vmatpush1.msra.mxu0 0.0
    %557 = vmatprep.subr.mxu0 0.0
    %558 = vmatpush1.msra.mxu0 0.0
    %559 = vmatprep.subr.mxu0 0.0
    %560 = vmatpush1.msra.mxu0 0.0
    %561 = vmatprep.mubr.f32.mxu0 0.0
    %562 = vmatmul.mubr.f32.gmra.mrb[0].mxu0 %v495
    %v563 = vpop.f32.mrb[0].mxu0
    %v564 = vadd.f32 0.0, %v563
    %v565 = vpop.f32.mrb[0].mxu0
    %566 = vdwg.mxu0
    %v567 = vld [vmem:[%s4] sm:$0xf]
    %v568 = vld [vmem:[%s4 + $0x4] sm:$0xf]
    %v569 = vld [vmem:[%s4 + $0x8] sm:$0xf]
    %v570 = vld [vmem:[%s4 + $0xc] sm:$0xf]
    %v571 = vld [vmem:[%s4 + $0x10] sm:$0xf]
    %v572 = vld [vmem:[%s4 + $0x14] sm:$0xf]
    %v573 = vld [vmem:[%s4 + $0x18] sm:$0xf]
    %v574 = vld [vmem:[%s4 + $0x1c] sm:$0xf]
    %v575 = vld [vmem:[%s4 + $0x20] sm:$0xf]
    %v576 = vld [vmem:[%s4 + $0x24] sm:$0xf]
    %v577 = vld [vmem:[%s4 + $0x28] sm:$0xf]
    %v578 = vld [vmem:[%s4 + $0x2c] sm:$0xf]
    %v579 = vld [vmem:[%s4 + $0x30] sm:$0xf]
    %v580 = vld [vmem:[%s4 + $0x34] sm:$0xf]
    %v581 = vld [vmem:[%s4 + $0x38] sm:$0xf]
    %v582 = vld [vmem:[%s4 + $0x3c] sm:$0xf]
    %v583 = vpack.c.bf16 %v564, %v564
    %v584 = vlaneseq
    %v585 = vshrl.u32 %v584, 7
    %v586 = vsub.s32 0, %v585
    %v587 = vrot.slane %v392, %v586
    %v592 = vunpack.c.l.b16 %v567
    %v593 = vunpack.c.l.b16 %v568
    %v594 = vunpack.c.l.b16 %v569
    %v595 = vunpack.c.l.b16 %v570
    %v596 = vpack.c.b16 %v593, %v592
    %v597 = vpack.c.b16 %v595, %v594
    %vm600 = vcmask 261120
    %v602 = vsel %vm600, %v583, 0
    %604 = vmatprep.subr.bf16.mxu0 0
    %605 = vmatpush1.bf16.msra.mxu0 %v596
    %606 = vmatprep.subr.bf16.mxu0 0
    %607 = vmatpush1.bf16.msra.mxu0 %v597
    %608 = vmatprep.subr.bf16.mxu0 0
    %609 = vmatpush1.bf16.msra.mxu0 0
    %610 = vmatprep.subr.bf16.mxu0 0
    %611 = vmatpush1.bf16.msra.mxu0 0
    %612 = vmatprep.subr.bf16.mxu0 0
    %613 = vmatpush1.bf16.msra.mxu0 0
    %614 = vmatprep.subr.bf16.mxu0 0
    %615 = vmatpush1.bf16.msra.mxu0 0
    %616 = vmatprep.subr.bf16.mxu0 0
    %617 = vmatpush1.bf16.msra.mxu0 0
    %618 = vmatprep.subr.bf16.mxu0 0
    %619 = vmatpush1.bf16.msra.mxu0 0
    %620 = vmatprep.subr.bf16.mxu0 0
    %621 = vmatpush1.bf16.msra.mxu0 0
    %622 = vmatprep.subr.bf16.mxu0 0
    %623 = vmatpush1.bf16.msra.mxu0 0
    %624 = vmatprep.subr.bf16.mxu0 0
    %625 = vmatpush1.bf16.msra.mxu0 0
    %626 = vmatprep.subr.bf16.mxu0 0
    %627 = vmatpush1.bf16.msra.mxu0 0
    %628 = vmatprep.subr.bf16.mxu0 0
    %629 = vmatpush1.bf16.msra.mxu0 0
    %630 = vmatprep.subr.bf16.mxu0 0
    %631 = vmatpush1.bf16.msra.mxu0 0
    %632 = vmatprep.subr.bf16.mxu0 0
    %633 = vmatpush1.bf16.msra.mxu0 0
    %634 = vmatprep.subr.bf16.mxu0 0
    %635 = vmatpush1.bf16.msra.mxu0 0
    %636 = vmatprep.mubr.bf16.mxu0 0
    %637 = vmatmul.mubr.bf16.gmra.mrb[0].mxu0 %v602
    %v638 = vpop.f32.mrb[0].mxu0
    %v639 = vadd.f32 %v587, %v638
    %v640 = vpop.f32.mrb[0].mxu0
    %v641 = vpop.f32.mrb[0].mxu0
    %v642 = vpop.f32.mrb[0].mxu0
    %643 = vdwg.mxu0
    %vm644 = vcmp.ge.f32.partialorder %v639, 0.0
    %v645 = vmul.f32 %v639, 0.01
    %v646 = vsel %vm644, %v639, %v645
    %v647 = vpack.c.bf16 %v646, %v646
    %v648 = vlaneseq
    %v649 = vshrl.u32 %v648, 7
    %v650 = vsub.s32 1, %v649
    %v651 = vrot.slane %v392, %v650
    %v660 = vunpack.c.l.b16 %v571
    %v661 = vunpack.c.l.b16 %v572
    %v662 = vunpack.c.l.b16 %v573
    %v663 = vunpack.c.l.b16 %v574
    %v664 = vunpack.c.l.b16 %v575
    %v665 = vunpack.c.l.b16 %v576
    %v666 = vunpack.c.l.b16 %v577
    %v667 = vunpack.c.l.b16 %v578
    %v668 = vpack.c.b16 %v661, %v660
    %v669 = vpack.c.b16 %v663, %v662
    %v670 = vpack.c.b16 %v665, %v664
    %v671 = vpack.c.b16 %v667, %v666
    %vm676 = vcmask 523264
    %v678 = vsel %vm676, %v647, 0
    %680 = vmatprep.subr.bf16.mxu0 0
    %681 = vmatpush1.bf16.msra.mxu0 %v668
    %682 = vmatprep.subr.bf16.mxu0 0
    %683 = vmatpush1.bf16.msra.mxu0 %v669
    %684 = vmatprep.subr.bf16.mxu0 0
    %685 = vmatpush1.bf16.msra.mxu0 %v670
    %686 = vmatprep.subr.bf16.mxu0 0
    %687 = vmatpush1.bf16.msra.mxu0 %v671
    %688 = vmatprep.subr.bf16.mxu0 0
    %689 = vmatpush1.bf16.msra.mxu0 0
    %690 = vmatprep.subr.bf16.mxu0 0
    %691 = vmatpush1.bf16.msra.mxu0 0
    %692 = vmatprep.subr.bf16.mxu0 0
    %693 = vmatpush1.bf16.msra.mxu0 0
    %694 = vmatprep.subr.bf16.mxu0 0
    %695 = vmatpush1.bf16.msra.mxu0 0
    %696 = vmatprep.subr.bf16.mxu0 0
    %697 = vmatpush1.bf16.msra.mxu0 0
    %698 = vmatprep.subr.bf16.mxu0 0
    %699 = vmatpush1.bf16.msra.mxu0 0
    %700 = vmatprep.subr.bf16.mxu0 0
    %701 = vmatpush1.bf16.msra.mxu0 0
    %702 = vmatprep.subr.bf16.mxu0 0
    %703 = vmatpush1.bf16.msra.mxu0 0
    %704 = vmatprep.subr.bf16.mxu0 0
    %705 = vmatpush1.bf16.msra.mxu0 0
    %706 = vmatprep.subr.bf16.mxu0 0
    %707 = vmatpush1.bf16.msra.mxu0 0
    %708 = vmatprep.subr.bf16.mxu0 0
    %709 = vmatpush1.bf16.msra.mxu0 0
    %710 = vmatprep.subr.bf16.mxu0 0
    %711 = vmatpush1.bf16.msra.mxu0 0
    %712 = vmatprep.mubr.bf16.mxu0 0
    %713 = vmatmul.mubr.bf16.gmra.mrb[0].mxu0 %v678
    %v714 = vpop.f32.mrb[0].mxu0
    %v715 = vadd.f32 %v651, %v714
    %v716 = vpop.f32.mrb[0].mxu0
    %v717 = vpop.f32.mrb[0].mxu0
    %v718 = vpop.f32.mrb[0].mxu0
    %719 = vdwg.mxu0
    %vm720 = vcmp.ge.f32.partialorder %v715, 0.0
    %v721 = vmul.f32 %v715, 0.01
    %v722 = vsel %vm720, %v715, %v721
    %v723 = vpack.c.bf16 %v722, %v722
    %v724 = vlaneseq
    %v725 = vshrl.u32 %v724, 7
    %v726 = vsub.s32 2, %v725
    %v727 = vrot.slane %v392, %v726
    %v732 = vunpack.c.l.b16 %v579
    %v733 = vunpack.c.l.b16 %v580
    %v734 = vunpack.c.l.b16 %v581
    %v735 = vunpack.c.l.b16 %v582
    %v736 = vpack.c.b16 %v733, %v732
    %v737 = vpack.c.b16 %v735, %v734
    %v741 = vsel %vm600, %v723, 0
    %743 = vmatprep.subr.bf16.mxu0 0
    %744 = vmatpush1.bf16.msra.mxu0 %v736
    %745 = vmatprep.subr.bf16.mxu0 0
    %746 = vmatpush1.bf16.msra.mxu0 %v737
    %747 = vmatprep.subr.bf16.mxu0 0
    %748 = vmatpush1.bf16.msra.mxu0 0
    %749 = vmatprep.subr.bf16.mxu0 0
    %750 = vmatpush1.bf16.msra.mxu0 0
    %751 = vmatprep.subr.bf16.mxu0 0
    %752 = vmatpush1.bf16.msra.mxu0 0
    %753 = vmatprep.subr.bf16.mxu0 0
    %754 = vmatpush1.bf16.msra.mxu0 0
    %755 = vmatprep.subr.bf16.mxu0 0
    %756 = vmatpush1.bf16.msra.mxu0 0
    %757 = vmatprep.subr.bf16.mxu0 0
    %758 = vmatpush1.bf16.msra.mxu0 0
    %759 = vmatprep.subr.bf16.mxu0 0
    %760 = vmatpush1.bf16.msra.mxu0 0
    %761 = vmatprep.subr.bf16.mxu0 0
    %762 = vmatpush1.bf16.msra.mxu0 0
    %763 = vmatprep.subr.bf16.mxu0 0
    %764 = vmatpush1.bf16.msra.mxu0 0
    %765 = vmatprep.subr.bf16.mxu0 0
    %766 = vmatpush1.bf16.msra.mxu0 0
    %767 = vmatprep.subr.bf16.mxu0 0
    %768 = vmatpush1.bf16.msra.mxu0 0
    %769 = vmatprep.subr.bf16.mxu0 0
    %770 = vmatpush1.bf16.msra.mxu0 0
    %771 = vmatprep.subr.bf16.mxu0 0
    %772 = vmatpush1.bf16.msra.mxu0 0
    %773 = vmatprep.subr.bf16.mxu0 0
    %774 = vmatpush1.bf16.msra.mxu0 0
    %775 = vmatprep.mubr.bf16.mxu0 0
    %776 = vmatmul.mubr.bf16.gmra.mrb[0].mxu0 %v741
    %v777 = vpop.f32.mrb[0].mxu0
    %v778 = vadd.f32 %v727, %v777
    %v779 = vpop.f32.mrb[0].mxu0
    %v780 = vpop.f32.mrb[0].mxu0
    %v781 = vpop.f32.mrb[0].mxu0
    %782 = vdwg.mxu0
    %v783 = vxor.u32 %v778, 2147483648
    %v784 = vmul.f32 %v783, 1.442695
    %v785 = vpow.pop %v784
    %v786 = vadd.f32 %v785, 1.0
    %v787 = vrcp.pop %v786
    %v788 = vmul.f32 1.0, %v787
    %v789 = vmul.f32 %v788, 4.0
    %v790 = vadd.f32 %v789, 1.0
    %791 = vst [vmem:[#allocation5] sm:$0x3] %v790
    // Predicated region
    $region30: #{tpu_custom_call.1} parent=1 // pred_check
      _
    $region31: #{tpu_custom_call.1} parent=1 // pred_check_branch
      %793 = sbr.rel (0) target = $region33
    $region32: #{tpu_custom_call.1} parent=1 // pred_region
      %s795 = ssub.s32 32, 32
      %796 = vsyncadd [#allocation4], %s795
      %s798 = sshll.u32 [#allocation5], 4
      %s799 = int_to_ptr.vmem [resolvable:$true] %s798
      %801 = dma.vmem_to_hbm [thread:$0]  %s799, 32, %s6, [#allocation4]
    $region33: #{tpu_custom_call.1} parent=1 // pred_fallthru
      _
    // Predicated region
    $region34: #{tpu_custom_call.1} parent=1 // pred_check
      _
    $region35: #{tpu_custom_call.1} parent=1 // pred_check_branch
      %803 = sbr.rel (0) target = $region37
    $region36: #{tpu_custom_call.1} parent=1 // pred_region
      %804 = dma.done [#allocation4], 32
    $region37: #{tpu_custom_call.1} parent=1 // pred_fallthru
      _
    %805 = vsyncpa [#allocation3], 1
    %806 = vsyncpa [#allocation4], 1

</llo_original>
